<compile_context>
chip_gen: v5e
topology: v5e:2x2
jax: 0.10.0
libtpu: 0.0.40
codegen_flags: <defaults>
</compile_context>

<pallas_src>
import functools

import jax
import jax.numpy as jnp
import numpy as np
from jax import lax
from jax.experimental import pallas as pl
from jax.experimental.pallas import tpu as pltpu


def _cumsumc_kernel(x_ref, colp_ref, scales2_ref, d2_ref, out_ref, *,
                    n_chunks, chunk):
    # x_ref:       (1, N)   VMEM  lane-dense input row
    # colp_ref:    (2S, 1)  VMEM  rows [0:S] = slopes, [S:2S] = c_norm*slopes
    # scales2_ref: (1, S)   VMEM  lane-dense scales^2 * mask (MXU matvec LHS)
    # d2_ref:      (1,)     SMEM  d^2
    # out_ref:     (1, N)   VMEM  (doubles as y-scratch between the passes)
    S = scales2_ref.shape[1]
    slopes = colp_ref[0:S, :]          # (S, 1)
    cslopes = colp_ref[S:2 * S, :]     # (S, 1)  = c_norm * slopes
    scales2 = scales2_ref[...]         # (1, S)

    # ---- pass 1: y[i] = sum_j scales2[j] * sigmoid(slopes[j]*x[i] - cslopes[j])
    def body(ci, carry):
        off = pl.multiple_of(ci * chunk, chunk)
        xc = x_ref[:, pl.ds(off, chunk)]                      # (1, CH)
        z = slopes * xc - cslopes                             # (S, CH)  VPU broadcast
        s = 0.5 * (jnp.tanh(0.5 * z) + 1.0)                   # (S, CH)  1 EUP op/elem
        yc = jnp.dot(scales2, s,
                     preferred_element_type=jnp.float32)      # (1, CH)  MXU matvec
        out_ref[:, pl.ds(off, chunk)] = yc
        return carry

    lax.fori_loop(0, n_chunks, body, 0, unroll=(n_chunks <= 8))

    # ---- pass 2: global (over N) min / log / softmax on the (1, N) row
    y = out_ref[...]                                          # (1, N)
    y_min = jnp.min(y, axis=1, keepdims=True)                 # (1, 1)
    w = jnp.log(y + jnp.abs(y_min) + d2_ref[0])               # (1, N)
    w_max = jnp.max(w, axis=1, keepdims=True)                 # (1, 1)
    e = jnp.exp(w - w_max)                                    # (1, N)
    denom = jnp.sum(e, axis=1, keepdims=True)                 # (1, 1)
    out_ref[...] = e * pl.reciprocal(denom, approx=True)
    # TODO(synk): PyTorch raises on NaN in the output; data-dependent host
    # exceptions have no in-kernel equivalent (caller may jnp.isnan-check).


def cumsumc_forward(x, scales, slopes, c, d, mask, range_begin, chunk=128):
    """x: (N,) float32. Returns softmax output of shape (N,)."""
    N = x.shape[0]
    S = slopes.shape[0]

    # --- parameter glue (tiny, stays in plain JAX) ---
    scales2 = (scales * scales) * mask                        # (S,)
    c_cum = jnp.cumsum(c)                                     # (S,)
    c_min, c_max = jnp.min(c_cum), jnp.max(c_cum)
    # NOTE: divides by (c_max - c_min), exactly like the PyTorch reference;
    # a constant cumsum would 0/0 here (not the case for this model's init).
    c_norm = (2.0 * range_begin * (c_cum - c_min) / (c_max - c_min)
              - range_begin)
    cslopes = c_norm * slopes                                 # (S,)
    d2 = jnp.reshape(d * d, (1,)).astype(jnp.float32)         # (1,) scalar in SMEM

    # Single sublane-oriented parameter slab: [slopes ; c_norm*slopes].
    colp = jnp.concatenate([slopes, cslopes]).reshape(2 * S, 1).astype(jnp.float32)
    scales2_row = scales2.reshape(1, S).astype(jnp.float32)   # lane-dense for MXU

    ch = chunk if (N >= chunk and N % chunk == 0) else N
    n_chunks = N // ch

    kernel = functools.partial(_cumsumc_kernel, n_chunks=n_chunks, chunk=ch)

    out = pl.pallas_call(
        kernel,
        out_shape=jax.ShapeDtypeStruct((1, N), jnp.float32),
        in_specs=[
            pl.BlockSpec(memory_space=pltpu.MemorySpace.VMEM),   # x (1, N)
            pl.BlockSpec(memory_space=pltpu.MemorySpace.VMEM),   # colp (2S, 1)
            pl.BlockSpec(memory_space=pltpu.MemorySpace.VMEM),   # scales2 (1, S)
            pl.BlockSpec(memory_space=pltpu.MemorySpace.SMEM),   # d2 (1,)
        ],
        out_specs=pl.BlockSpec(memory_space=pltpu.MemorySpace.VMEM),
    )(
        x.reshape(1, N).astype(jnp.float32),
        colp,
        scales2_row,
        d2,
    )
    return out.reshape(N)


def cumsumc_reference(x, scales, slopes, c, d, mask, range_begin):
    """Pure-JAX reference mirroring the PyTorch forward (float32)."""
    scales2 = scales * scales * mask
    cc = jnp.cumsum(c)
    cn = (2.0 * range_begin * (cc - jnp.min(cc)) / (jnp.max(cc) - jnp.min(cc))
          - range_begin)
    z = x[:, None] * slopes[None, :] - cn[None, :] * slopes[None, :]
    s = jax.nn.sigmoid(z)
    y = jnp.sum(scales2[None, :] * s, axis=1)
    w = jnp.log(y + jnp.abs(jnp.min(y)) + d * d)
    return jax.nn.softmax(w, axis=0)


if __name__ == "__main__":
    # Synthetic deterministic config (mirrors __init__ args):
    #   sig_num = 2 * range_begin (required for scales * mask to broadcast)
    element_size = 256
    range_begin = 64
    sig_num = 2 * range_begin        # 128
    slope = 2.0
    bias = 0.1
    N = 128                          # number of input elements

    key = jax.random.PRNGKey(0)
    k_scales, k_x = jax.random.split(key)

    # Parameters (random_init=True style for scales, constants otherwise).
    scales = jax.random.uniform(k_scales, (sig_num,), dtype=jnp.float32)
    slopes = jnp.full((sig_num,), slope, dtype=jnp.float32)
    c = jnp.full((sig_num,), 2.0 * range_begin / sig_num, dtype=jnp.float32)
    d = jnp.asarray(bias, dtype=jnp.float32)
    mask = jnp.concatenate(
        [jnp.ones((range_begin,), jnp.float32), -jnp.ones((range_begin,), jnp.float32)]
    )

    # Input: 1-D vector of "element" values.
    x = jax.random.uniform(k_x, (N,), dtype=jnp.float32) * element_size

    out = cumsumc_forward(x, scales, slopes, c, d, mask, float(range_begin))
    out = jax.block_until_ready(out)

    ref = cumsumc_reference(x, scales, slopes, c, d, mask, float(range_begin))
    np.testing.assert_allclose(np.asarray(out), np.asarray(ref), rtol=5e-3, atol=1e-5)
    assert abs(float(jnp.sum(out)) - 1.0) < 5e-3  # softmax sanity (approx recip)

    print("KERNEL_OK")
</pallas_src>

<mosaic_0001>
module attributes {stable_mosaic.version = 11 : i64} {
  func.func @_cumsumc_kernel(%arg0: memref<1x128xf32, #tpu.memory_space<vmem>>, %arg1: memref<256x1xf32, #tpu.memory_space<vmem>>, %arg2: memref<1x128xf32, #tpu.memory_space<vmem>>, %arg3: memref<1xf32, #tpu.memory_space<smem>>, %arg4: memref<1x128xf32, #tpu.memory_space<vmem>>) attributes {dimension_semantics = [], scalar_prefetch = 0 : i64, scratch_operands = 0 : i64, tpu.core_type = #tpu.core_type<tc>} {
    %c0 = arith.constant 0 : index
    %c0_0 = arith.constant 0 : index
    %0 = vector.load %arg1[%c0, %c0_0] : memref<256x1xf32, #tpu.memory_space<vmem>>, vector<128x1xf32>
    %c128 = arith.constant 128 : index
    %c0_1 = arith.constant 0 : index
    %1 = vector.load %arg1[%c128, %c0_1] : memref<256x1xf32, #tpu.memory_space<vmem>>, vector<128x1xf32>
    %c0_2 = arith.constant 0 : index
    %c0_3 = arith.constant 0 : index
    %2 = vector.load %arg2[%c0_2, %c0_3] : memref<1x128xf32, #tpu.memory_space<vmem>>, vector<1x128xf32>
    %c0_i32 = arith.constant 0 : i32
    %c128_i32 = arith.constant 128 : i32
    %3 = arith.muli %c0_i32, %c128_i32 : i32
    %4 = tpu.assume_multiple %3, 128 : i32
    %c0_4 = arith.constant 0 : index
    %5 = arith.index_cast %4 : i32 to index
    %6 = vector.load %arg0[%c0_4, %5] : memref<1x128xf32, #tpu.memory_space<vmem>>, vector<1x128xf32>
    %7 = vector.broadcast %0 : vector<128x1xf32> to vector<128x128xf32>
    %8 = vector.broadcast %6 : vector<1x128xf32> to vector<128x128xf32>
    %9 = arith.mulf %7, %8 : vector<128x128xf32>
    %10 = vector.broadcast %1 : vector<128x1xf32> to vector<128x128xf32>
    %11 = arith.subf %9, %10 : vector<128x128xf32>
    %cst = arith.constant 5.000000e-01 : f32
    %12 = vector.broadcast %cst : f32 to vector<128x128xf32>
    %13 = arith.mulf %12, %11 : vector<128x128xf32>
    %14 = math.tanh %13 : vector<128x128xf32>
    %cst_5 = arith.constant 1.000000e+00 : f32
    %15 = vector.broadcast %cst_5 : f32 to vector<128x128xf32>
    %16 = arith.addf %14, %15 : vector<128x128xf32>
    %cst_6 = arith.constant 5.000000e-01 : f32
    %17 = vector.broadcast %cst_6 : f32 to vector<128x128xf32>
    %18 = arith.mulf %17, %16 : vector<128x128xf32>
    %cst_7 = arith.constant dense<0.000000e+00> : vector<1x128xf32>
    %19 = tpu.matmul %2, %18, %cst_7 {dimension_numbers = #tpu.dot_dimension_numbers<[1], [0], [0], [1], [0, 0, 1, 1], [], []>} : vector<1x128xf32>, vector<128x128xf32>, vector<1x128xf32> -> vector<1x128xf32>
    %c0_8 = arith.constant 0 : index
    %20 = arith.index_cast %4 : i32 to index
    %21 = vector.load %arg4[%c0_8, %20] : memref<1x128xf32, #tpu.memory_space<vmem>>, vector<1x128xf32>
    tpu.vector_store %arg4[%c0_8, %20], %19 {strides = array<i32>} : memref<1x128xf32, #tpu.memory_space<vmem>>, vector<1x128xf32>,
    %c1_i32 = arith.constant 1 : i32
    %c0_9 = arith.constant 0 : index
    %c0_10 = arith.constant 0 : index
    %22 = vector.load %arg4[%c0_9, %c0_10] : memref<1x128xf32, #tpu.memory_space<vmem>>, vector<1x128xf32>
    %cst_11 = arith.constant dense<0x7F800000> : vector<1xf32>
    %23 = vector.multi_reduction <minimumf>, %22, %cst_11 [1] : vector<1x128xf32> to vector<1xf32>
    %24 = vector.shape_cast %23 : vector<1xf32> to vector<1x1xf32>
    %25 = math.absf %24 : vector<1x1xf32>
    %26 = vector.broadcast %25 : vector<1x1xf32> to vector<1x128xf32>
    %27 = arith.addf %22, %26 : vector<1x128xf32>
    %c0_12 = arith.constant 0 : index
    %28 = memref.load %arg3[%c0_12] : memref<1xf32, #tpu.memory_space<smem>>
    %29 = vector.broadcast %28 : f32 to vector<1x128xf32>
    %30 = arith.addf %27, %29 : vector<1x128xf32>
    %31 = math.log %30 : vector<1x128xf32>
    %cst_13 = arith.constant dense<0xFF800000> : vector<1xf32>
    %32 = vector.multi_reduction <maximumf>, %31, %cst_13 [1] : vector<1x128xf32> to vector<1xf32>
    %33 = vector.shape_cast %32 : vector<1xf32> to vector<1x1xf32>
    %34 = vector.broadcast %33 : vector<1x1xf32> to vector<1x128xf32>
    %35 = arith.subf %31, %34 : vector<1x128xf32>
    %36 = math.exp %35 : vector<1x128xf32>
    %cst_14 = arith.constant dense<0.000000e+00> : vector<1xf32>
    %37 = vector.multi_reduction <add>, %36, %cst_14 [1] : vector<1x128xf32> to vector<1xf32>
    %38 = vector.shape_cast %37 : vector<1xf32> to vector<1x1xf32>
    %39 = tpu.reciprocal %38 {approx = true} : vector<1x1xf32> -> vector<1x1xf32>
    %40 = vector.broadcast %39 : vector<1x1xf32> to vector<1x128xf32>
    %41 = arith.mulf %36, %40 : vector<1x128xf32>
    %c0_15 = arith.constant 0 : index
    %c0_16 = arith.constant 0 : index
    %42 = vector.load %arg4[%c0_15, %c0_16] : memref<1x128xf32, #tpu.memory_space<vmem>>, vector<1x128xf32>
    tpu.vector_store %arg4[%c0_15, %c0_16], %41 {strides = array<i32>} : memref<1x128xf32, #tpu.memory_space<vmem>>, vector<1x128xf32>,
    return
  }
}

</mosaic_0001>

<llo_original>
// kernel: tpu_custom_call.1
$region0: #{tpu_custom_call.1}
  #allocation0 [shape = 'u32[]', space=smem, size = 0x4, offset = 0x4, fixed_abs, tag = 'smem constant byte address 0x4 - core index']
  #allocation1 [shape = 'u32[72,128]{1,0:T(1,128)}', space=vmem, size = 0x9000, scoped, tag = 'internal scratch']
  #allocation2 [shape = 'f32[1]{0:T(128)S(6)}', space=smem, size = 0x200, scoped, tag = 'scoped memory for tpu_custom_call.1']
  %s0 = inlined_call_operand.vmem [shape: f32[1,128], index: 0, kind: input, shape index: {}]
  %s1 = inlined_call_operand.vmem [shape: f32[256,1], index: 1, kind: input, shape index: {}]
  %s2 = inlined_call_operand.vmem [shape: f32[1,128], index: 2, kind: input, shape index: {}]
  %s3 = inlined_call_operand.<no memory space> [shape: f32[1], index: 3, kind: input, shape index: {}]
  %s4 = inlined_call_operand.hbm [shape: f32[1,128], index: 4, kind: output, shape index: {}]
  %s5 = sld [smem:[#allocation0]]
  $region26: #{tpu_custom_call.1} parent=0
    _
  %s7 = ssub.s32 1, %s5
  %s8 = scalar_select 0, %s7, %s5
  %9 = sst [smem:[#allocation2]] %s3
  $region1: #{tpu_custom_call.1} parent=0
    #allocation3 [shape = 'u8[512]{0}', space=vmem, size = 0x400, scoped, tag = 'output window, operand 0, single buffered']
    #allocation4 [shape = 's32[1]{0}', space=sflag, size = 0x4, scoped, tag = 'scoped memory for tpu_custom_call.1']
    %10 = vsyncpa [#allocation4], 0
    // Predicated region
    $region2: #{tpu_custom_call.1} parent=1 // pred_check
      _
    $region3: #{tpu_custom_call.1} parent=1 // pred_check_branch
      %12 = sbr.rel (0) target = $region5
    $region4: #{tpu_custom_call.1} parent=1 // pred_region
      _
    $region5: #{tpu_custom_call.1} parent=1 // pred_fallthru
      _
    // Predicated region
    $region6: #{tpu_custom_call.1} parent=1 // pred_check
      _
    $region7: #{tpu_custom_call.1} parent=1 // pred_check_branch
      %14 = sbr.rel (0) target = $region9
    $region8: #{tpu_custom_call.1} parent=1 // pred_region
      _
    $region9: #{tpu_custom_call.1} parent=1 // pred_fallthru
      _
    // Predicated region
    $region10: #{tpu_custom_call.1} parent=1 // pred_check
      _
    $region11: #{tpu_custom_call.1} parent=1 // pred_check_branch
      %16 = sbr.rel (0) target = $region13
    $region12: #{tpu_custom_call.1} parent=1 // pred_region
      _
    $region13: #{tpu_custom_call.1} parent=1 // pred_fallthru
      _
    // Predicated region
    $region14: #{tpu_custom_call.1} parent=1 // pred_check
      _
    $region15: #{tpu_custom_call.1} parent=1 // pred_check_branch
      %18 = sbr.rel (0) target = $region17
    $region16: #{tpu_custom_call.1} parent=1 // pred_region
      _
    $region17: #{tpu_custom_call.1} parent=1 // pred_fallthru
      _
    %v19 = vld [vmem:[%s1] sm:$0xff]
    %v20 = vld [vmem:[%s1 + $0x8] sm:$0xff]
    %v21 = vld [vmem:[%s1 + $0x10] sm:$0xff]
    %v22 = vld [vmem:[%s1 + $0x18] sm:$0xff]
    %v23 = vld [vmem:[%s1 + $0x20] sm:$0xff]
    %v24 = vld [vmem:[%s1 + $0x28] sm:$0xff]
    %v25 = vld [vmem:[%s1 + $0x30] sm:$0xff]
    %v26 = vld [vmem:[%s1 + $0x38] sm:$0xff]
    %v27 = vld [vmem:[%s1 + $0x40] sm:$0xff]
    %v28 = vld [vmem:[%s1 + $0x48] sm:$0xff]
    %v29 = vld [vmem:[%s1 + $0x50] sm:$0xff]
    %v30 = vld [vmem:[%s1 + $0x58] sm:$0xff]
    %v31 = vld [vmem:[%s1 + $0x60] sm:$0xff]
    %v32 = vld [vmem:[%s1 + $0x68] sm:$0xff]
    %v33 = vld [vmem:[%s1 + $0x70] sm:$0xff]
    %v34 = vld [vmem:[%s1 + $0x78] sm:$0xff]
    %v35 = vld [vmem:[%s1 + $0x80] sm:$0xff]
    %v36 = vld [vmem:[%s1 + $0x88] sm:$0xff]
    %v37 = vld [vmem:[%s1 + $0x90] sm:$0xff]
    %v38 = vld [vmem:[%s1 + $0x98] sm:$0xff]
    %v39 = vld [vmem:[%s1 + $0xa0] sm:$0xff]
    %v40 = vld [vmem:[%s1 + $0xa8] sm:$0xff]
    %v41 = vld [vmem:[%s1 + $0xb0] sm:$0xff]
    %v42 = vld [vmem:[%s1 + $0xb8] sm:$0xff]
    %v43 = vld [vmem:[%s1 + $0xc0] sm:$0xff]
    %v44 = vld [vmem:[%s1 + $0xc8] sm:$0xff]
    %v45 = vld [vmem:[%s1 + $0xd0] sm:$0xff]
    %v46 = vld [vmem:[%s1 + $0xd8] sm:$0xff]
    %v47 = vld [vmem:[%s1 + $0xe0] sm:$0xff]
    %v48 = vld [vmem:[%s1 + $0xe8] sm:$0xff]
    %v49 = vld [vmem:[%s1 + $0xf0] sm:$0xff]
    %v50 = vld [vmem:[%s1 + $0xf8] sm:$0xff]
    %v51 = vld [vmem:[%s2] sm:$0x1]
    %v52 = vld [vmem:[%s0] sm:$0x1]
    %54 = vset.pattern.permute.xlu0 0
    %55 = vperm.xlu0 %54, %v19
    %v56 = vpop.permute.xlu0 %55
    %59 = vset.pattern.permute.xlu0 0
    %60 = vperm.xlu0 %59, %v20
    %v61 = vpop.permute.xlu0 %60
    %64 = vset.pattern.permute.xlu0 0
    %65 = vperm.xlu0 %64, %v21
    %v66 = vpop.permute.xlu0 %65
    %69 = vset.pattern.permute.xlu0 0
    %70 = vperm.xlu0 %69, %v22
    %v71 = vpop.permute.xlu0 %70
    %74 = vset.pattern.permute.xlu0 0
    %75 = vperm.xlu0 %74, %v23
    %v76 = vpop.permute.xlu0 %75
    %79 = vset.pattern.permute.xlu0 0
    %80 = vperm.xlu0 %79, %v24
    %v81 = vpop.permute.xlu0 %80
    %84 = vset.pattern.permute.xlu0 0
    %85 = vperm.xlu0 %84, %v25
    %v86 = vpop.permute.xlu0 %85
    %89 = vset.pattern.permute.xlu0 0
    %90 = vperm.xlu0 %89, %v26
    %v91 = vpop.permute.xlu0 %90
    %94 = vset.pattern.permute.xlu0 0
    %95 = vperm.xlu0 %94, %v27
    %v96 = vpop.permute.xlu0 %95
    %99 = vset.pattern.permute.xlu0 0
    %100 = vperm.xlu0 %99, %v28
    %v101 = vpop.permute.xlu0 %100
    %104 = vset.pattern.permute.xlu0 0
    %105 = vperm.xlu0 %104, %v29
    %v106 = vpop.permute.xlu0 %105
    %109 = vset.pattern.permute.xlu0 0
    %110 = vperm.xlu0 %109, %v30
    %v111 = vpop.permute.xlu0 %110
    %114 = vset.pattern.permute.xlu0 0
    %115 = vperm.xlu0 %114, %v31
    %v116 = vpop.permute.xlu0 %115
    %119 = vset.pattern.permute.xlu0 0
    %120 = vperm.xlu0 %119, %v32
    %v121 = vpop.permute.xlu0 %120
    %124 = vset.pattern.permute.xlu0 0
    %125 = vperm.xlu0 %124, %v33
    %v126 = vpop.permute.xlu0 %125
    %129 = vset.pattern.permute.xlu0 0
    %130 = vperm.xlu0 %129, %v34
    %v131 = vpop.permute.xlu0 %130
    %v134 = vperm.slane %v52, 0
    %v136 = vmul.f32 %v56, %v134
    %v137 = vmul.f32 %v61, %v134
    %v138 = vmul.f32 %v66, %v134
    %v139 = vmul.f32 %v71, %v134
    %v140 = vmul.f32 %v76, %v134
    %v141 = vmul.f32 %v81, %v134
    %v142 = vmul.f32 %v86, %v134
    %v143 = vmul.f32 %v91, %v134
    %v144 = vmul.f32 %v96, %v134
    %v145 = vmul.f32 %v101, %v134
    %v146 = vmul.f32 %v106, %v134
    %v147 = vmul.f32 %v111, %v134
    %v148 = vmul.f32 %v116, %v134
    %v149 = vmul.f32 %v121, %v134
    %v150 = vmul.f32 %v126, %v134
    %v151 = vmul.f32 %v131, %v134
    %153 = vset.pattern.permute.xlu0 0
    %154 = vperm.xlu0 %153, %v35
    %v155 = vpop.permute.xlu0 %154
    %158 = vset.pattern.permute.xlu0 0
    %159 = vperm.xlu0 %158, %v36
    %v160 = vpop.permute.xlu0 %159
    %163 = vset.pattern.permute.xlu0 0
    %164 = vperm.xlu0 %163, %v37
    %v165 = vpop.permute.xlu0 %164
    %168 = vset.pattern.permute.xlu0 0
    %169 = vperm.xlu0 %168, %v38
    %v170 = vpop.permute.xlu0 %169
    %173 = vset.pattern.permute.xlu0 0
    %174 = vperm.xlu0 %173, %v39
    %v175 = vpop.permute.xlu0 %174
    %178 = vset.pattern.permute.xlu0 0
    %179 = vperm.xlu0 %178, %v40
    %v180 = vpop.permute.xlu0 %179
    %183 = vset.pattern.permute.xlu0 0
    %184 = vperm.xlu0 %183, %v41
    %v185 = vpop.permute.xlu0 %184
    %188 = vset.pattern.permute.xlu0 0
    %189 = vperm.xlu0 %188, %v42
    %v190 = vpop.permute.xlu0 %189
    %193 = vset.pattern.permute.xlu0 0
    %194 = vperm.xlu0 %193, %v43
    %v195 = vpop.permute.xlu0 %194
    %198 = vset.pattern.permute.xlu0 0
    %199 = vperm.xlu0 %198, %v44
    %v200 = vpop.permute.xlu0 %199
    %203 = vset.pattern.permute.xlu0 0
    %204 = vperm.xlu0 %203, %v45
    %v205 = vpop.permute.xlu0 %204
    %208 = vset.pattern.permute.xlu0 0
    %209 = vperm.xlu0 %208, %v46
    %v210 = vpop.permute.xlu0 %209
    %213 = vset.pattern.permute.xlu0 0
    %214 = vperm.xlu0 %213, %v47
    %v215 = vpop.permute.xlu0 %214
    %218 = vset.pattern.permute.xlu0 0
    %219 = vperm.xlu0 %218, %v48
    %v220 = vpop.permute.xlu0 %219
    %223 = vset.pattern.permute.xlu0 0
    %224 = vperm.xlu0 %223, %v49
    %v225 = vpop.permute.xlu0 %224
    %228 = vset.pattern.permute.xlu0 0
    %229 = vperm.xlu0 %228, %v50
    %v230 = vpop.permute.xlu0 %229
    %v232 = vsub.f32 %v136, %v155
    %v233 = vsub.f32 %v137, %v160
    %v234 = vsub.f32 %v138, %v165
    %v235 = vsub.f32 %v139, %v170
    %v236 = vsub.f32 %v140, %v175
    %v237 = vsub.f32 %v141, %v180
    %v238 = vsub.f32 %v142, %v185
    %v239 = vsub.f32 %v143, %v190
    %v240 = vsub.f32 %v144, %v195
    %v241 = vsub.f32 %v145, %v200
    %v242 = vsub.f32 %v146, %v205
    %v243 = vsub.f32 %v147, %v210
    %v244 = vsub.f32 %v148, %v215
    %v245 = vsub.f32 %v149, %v220
    %v246 = vsub.f32 %v150, %v225
    %v247 = vsub.f32 %v151, %v230
    %v248 = vmul.f32 %v232, 0.5
    %v249 = vmul.f32 %v233, 0.5
    %v250 = vmul.f32 %v234, 0.5
    %v251 = vmul.f32 %v235, 0.5
    %v252 = vmul.f32 %v236, 0.5
    %v253 = vmul.f32 %v237, 0.5
    %v254 = vmul.f32 %v238, 0.5
    %v255 = vmul.f32 %v239, 0.5
    %v256 = vmul.f32 %v240, 0.5
    %v257 = vmul.f32 %v241, 0.5
    %v258 = vmul.f32 %v242, 0.5
    %v259 = vmul.f32 %v243, 0.5
    %v260 = vmul.f32 %v244, 0.5
    %v261 = vmul.f32 %v245, 0.5
    %v262 = vmul.f32 %v246, 0.5
    %v263 = vmul.f32 %v247, 0.5
    %v264 = vtanh.pop %v248
    %v265 = vtanh.pop %v249
    %v266 = vtanh.pop %v250
    %v267 = vtanh.pop %v251
    %v268 = vtanh.pop %v252
    %v269 = vtanh.pop %v253
    %v270 = vtanh.pop %v254
    %v271 = vtanh.pop %v255
    %v272 = vtanh.pop %v256
    %v273 = vtanh.pop %v257
    %v274 = vtanh.pop %v258
    %v275 = vtanh.pop %v259
    %v276 = vtanh.pop %v260
    %v277 = vtanh.pop %v261
    %v278 = vtanh.pop %v262
    %v279 = vtanh.pop %v263
    %v280 = vadd.f32 %v264, 1.0
    %v281 = vadd.f32 %v265, 1.0
    %v282 = vadd.f32 %v266, 1.0
    %v283 = vadd.f32 %v267, 1.0
    %v284 = vadd.f32 %v268, 1.0
    %v285 = vadd.f32 %v269, 1.0
    %v286 = vadd.f32 %v270, 1.0
    %v287 = vadd.f32 %v271, 1.0
    %v288 = vadd.f32 %v272, 1.0
    %v289 = vadd.f32 %v273, 1.0
    %v290 = vadd.f32 %v274, 1.0
    %v291 = vadd.f32 %v275, 1.0
    %v292 = vadd.f32 %v276, 1.0
    %v293 = vadd.f32 %v277, 1.0
    %v294 = vadd.f32 %v278, 1.0
    %v295 = vadd.f32 %v279, 1.0
    %v296 = vmul.f32 %v280, 0.5
    %v297 = vmul.f32 %v281, 0.5
    %v298 = vmul.f32 %v282, 0.5
    %v299 = vmul.f32 %v283, 0.5
    %v300 = vmul.f32 %v284, 0.5
    %v301 = vmul.f32 %v285, 0.5
    %v302 = vmul.f32 %v286, 0.5
    %v303 = vmul.f32 %v287, 0.5
    %v304 = vmul.f32 %v288, 0.5
    %v305 = vmul.f32 %v289, 0.5
    %v306 = vmul.f32 %v290, 0.5
    %v307 = vmul.f32 %v291, 0.5
    %v308 = vmul.f32 %v292, 0.5
    %v309 = vmul.f32 %v293, 0.5
    %v310 = vmul.f32 %v294, 0.5
    %v311 = vmul.f32 %v295, 0.5
    %312 = vmatpush.msra.mxu0 %v311
    %313 = vmatpush.msra.mxu0 %v310
    %314 = vmatpush.msra.mxu0 %v309
    %315 = vmatpush.msra.mxu0 %v308
    %316 = vmatpush.msra.mxu0 %v307
    %317 = vmatpush.msra.mxu0 %v306
    %318 = vmatpush.msra.mxu0 %v305
    %319 = vmatpush.msra.mxu0 %v304
    %320 = vmatpush.msra.mxu0 %v303
    %321 = vmatpush.msra.mxu0 %v302
    %322 = vmatpush.msra.mxu0 %v301
    %323 = vmatpush.msra.mxu0 %v300
    %324 = vmatpush.msra.mxu0 %v299
    %325 = vmatpush.msra.mxu0 %v298
    %326 = vmatpush.msra.mxu0 %v297
    %327 = vmatpush.msra.mxu0 %v296
    %328 = vmatmul.f32.gmra.mxu0 %v51
    %v329 = vpop.f32.mrf.mxu0
    %v330 = vadd.f32 0.0, %v329
    %331 = vdwg.mxu0
    %332 = vst [vmem:[#allocation3] sm:$0x1] %v330
    %v333 = vld [vmem:[#allocation3] sm:$0x1]
    %vm334 = vcmask 1040384
    %v335 = vsel %vm334, %v333, inf
    %336 = vmin.xlane.f32.xlu0 %v335
    %v337 = vpop.xlane.xlu0 %336
    %v338 = vand.u32 2147483647, %v337
    %v339 = vadd.f32 %v333, %v338
    %s340 = sld [smem:[#allocation2]]
    %v341 = vstv %s340
    %v342 = vadd.f32 %v339, %v341
    %v343 = vlog2.pop %v342
    %v344 = vmul.f32 %v343, 0.6931472
    %v345 = vsel %vm334, %v344, -inf
    %346 = vmax.xlane.f32.xlu0 %v345
    %v347 = vpop.xlane.xlu0 %346
    %v348 = vsub.f32 %v344, %v347
    %v349 = vmul.f32 %v348, 1.442695
    %v350 = vpow.pop %v349
    %v351 = vsel %vm334, %v350, 0.0
    %352 = vadd.xlane.f32.xlu0 %v351
    %v353 = vpop.xlane.xlu0 %352
    %v354 = vrcp.pop %v353
    %v355 = vmul.f32 %v350, %v354
    %356 = vst [vmem:[#allocation3] sm:$0x1] %v355
    // Predicated region
    $region18: #{tpu_custom_call.1} parent=1 // pred_check
      _
    $region19: #{tpu_custom_call.1} parent=1 // pred_check_branch
      %358 = sbr.rel (0) target = $region21
    $region20: #{tpu_custom_call.1} parent=1 // pred_region
      %360 = vsyncadd [#allocation4], 0
      %s362 = sshll.u32 [#allocation3], 4
      %s363 = int_to_ptr.vmem [resolvable:$true] %s362
      %s364 = sshll.u32 %s4, 4
      %s365 = int_to_ptr.hbm [resolvable:$true] %s364
      %367 = dma.vmem_to_hbm [thread:$0]  %s363, 16, %s365, [#allocation4]
    $region21: #{tpu_custom_call.1} parent=1 // pred_fallthru
      _
    // Predicated region
    $region22: #{tpu_custom_call.1} parent=1 // pred_check
      _
    $region23: #{tpu_custom_call.1} parent=1 // pred_check_branch
      %369 = sbr.rel (0) target = $region25
    $region24: #{tpu_custom_call.1} parent=1 // pred_region
      %371 = dma.done [#allocation4], 16
    $region25: #{tpu_custom_call.1} parent=1 // pred_fallthru
      _
    %372 = vsyncpa [#allocation4], 1

</llo_original>
